<compile_context>
chip_gen: v7x
topology: tpu7x:2x2x1
jax: 0.10.0
libtpu: 0.0.40
codegen_flags: <defaults>
</compile_context>

<pallas_src>
import functools
import math

import jax
import jax.numpy as jnp
from jax.experimental import pallas as pl
from jax.experimental.pallas import tpu as pltpu

# ----------------------------- config ---------------------------------------
B = 2                 # number of input images
IMG_C, IMG_H, IMG_W = 3, 16, 16
FEAT_C = 32           # backbone output channels (feature stride = 1)
NUM_ANCHORS = 4       # anchors per feature-map location
ANCHOR_SIZES = (4.0, 6.0, 8.0, 12.0)
PRE_NMS_TOP_N = 64    # proposals kept per image
POOL = 7              # roi pooling output resolution
REPR_SIZE = 256       # TwoMLPHead representation size
NUM_CLASSES = 8       # including background (class 0)
BBOX_XFORM_CLIP = math.log(1000.0 / 16.0)
OUT_LANES = 128       # every kernel output is a 128-lane-dense slab


def _is_megacore():
    """True on chips with 2 TensorCores (keep >=2 parallel grid steps there)."""
    try:
        kind = jax.devices()[0].device_kind.lower()
    except Exception:
        return False
    return any(t in kind for t in ("v7", "7x", "v5p", "v5 p", "v4"))


# --------------------------- in-kernel helpers --------------------------------
def _decode_lanes(raw, size_l, center_l, lane, img_h, img_w):
    """Full-128-lane box decode (runs on whole vregs, one final mask).

    raw lanes   : 8:16 dx | 16:24 dy | 24:32 dw | 32:40 dh   (per anchor / class)
    size_l      : 8:16 w  | 16:24 h  | 24:32 w  | 32:40 h    (anchor / proposal)
    center_l    : 8:16 cx | 16:24 cy | 24:32 0  | 32:40 0
    returns     : 8:16 x1 | 16:24 y1 | 24:32 x2 | 32:40 y2 (clipped), 0 elsewhere
    """
    is_delta = jnp.logical_and(lane >= 8, lane < 40)
    is_exp = jnp.logical_and(lane >= 24, lane < 40)
    # clamp dw/dh + exp only on the w/h lanes (EUP); pass the rest through
    d = jnp.where(is_exp, jnp.exp(jnp.minimum(raw, BBOX_XFORM_CLIP)), raw)
    # lanes -> 8:16 pcx | 16:24 pcy | 24:32 pw | 32:40 ph
    scaled = d * size_l + center_l
    half = 0.5 * scaled
    # x1,y1 = pc - 0.5*p(w,h): pull lanes +16 down; x2,y2 = pc + 0.5*p(w,h): push pc up
    from_hi = pltpu.roll(half, shift=OUT_LANES - 16, axis=1)    # lane i <- lane i+16
    from_lo = pltpu.roll(scaled, shift=16, axis=1)              # lane i <- lane i-16
    boxes = jnp.where(lane < 24, scaled - from_hi, from_lo + half)
    is_y = jnp.logical_or(jnp.logical_and(lane >= 16, lane < 24),
                          jnp.logical_and(lane >= 32, lane < 40))
    boxes = jnp.clip(boxes, 0.0, jnp.where(is_y, float(img_h), float(img_w)))
    return jnp.where(is_delta, boxes, 0.0)


# --------------------------- Pallas kernels ----------------------------------
def _conv_matmul_kernel(x_ref, w_ref, b_ref, o_ref):
    # x:(tile_m,128) bf16, w:(128,128) bf16 block-diag, b:(1,128) f32
    # -> relu(x@w + b) f32, one full 128-lane store
    y = jnp.dot(x_ref[...], w_ref[...], preferred_element_type=jnp.float32)
    o_ref[...] = jnp.maximum(y + b_ref[...], 0.0)


def _rpn_fused_kernel(p_ref, sz_ref, ct_ref, wc_ref, bc_ref, wh_ref, bh_ref, o_ref,
                      *, img_h, img_w):
    # 3x3 rpn conv (im2col matmul) + relu, kept entirely in VMEM
    t = jnp.dot(p_ref[...], wc_ref[...], preferred_element_type=jnp.float32) + bc_ref[...]
    t = jnp.maximum(t, 0.0).astype(jnp.bfloat16)
    # packed heads: lanes 0:4 objectness; 8:16 dx | 16:24 dy | 24:32 dw | 32:40 dh
    raw = jnp.dot(t, wh_ref[...], preferred_element_type=jnp.float32) + bh_ref[...]

    lane = jax.lax.broadcasted_iota(jnp.int32, raw.shape, 1)
    boxes = _decode_lanes(raw, sz_ref[...], ct_ref[...], lane, img_h, img_w)
    # lanes 0:8 objectness logits passthrough, 8:40 clipped boxes, rest 0 — ONE store
    o_ref[...] = jnp.where(lane < 8, raw, boxes)


def _roi_fused_kernel(x_ref, sz_ref, ct_ref, w6_ref, b6_ref, w7_ref, b7_ref,
                      wo_ref, bo_ref, o_ref, *, img_h, img_w):
    # TwoMLPHead: fc6 + relu, fc7 + relu (held in VMEM, never written to HBM)
    h6 = jnp.dot(x_ref[...], w6_ref[...], preferred_element_type=jnp.float32) + b6_ref[...]
    h6 = jnp.maximum(h6, 0.0).astype(jnp.bfloat16)
    h7 = jnp.dot(h6, w7_ref[...], preferred_element_type=jnp.float32) + b7_ref[...]
    h7 = jnp.maximum(h7, 0.0).astype(jnp.bfloat16)
    # FastRCNNPredictor: cls + bbox packed into one 128-lane matmul
    raw = jnp.dot(h7, wo_ref[...], preferred_element_type=jnp.float32) + bo_ref[...]

    lane = jax.lax.broadcasted_iota(jnp.int32, raw.shape, 1)
    is_logit = lane < NUM_CLASSES
    # full-width masked softmax over the NUM_CLASSES logit lanes (exact division)
    neg = jnp.where(is_logit, raw, -jnp.inf)
    mx = jnp.max(neg, axis=-1, keepdims=True)
    e = jnp.where(is_logit, jnp.exp(raw - mx), 0.0)
    probs = e / jnp.sum(e, axis=-1, keepdims=True)

    boxes = _decode_lanes(raw, sz_ref[...], ct_ref[...], lane, img_h, img_w)
    # lanes 0:8 class probs, 8:40 per-class clipped boxes, rest 0 — ONE store
    o_ref[...] = jnp.where(is_logit, probs, boxes)


# --------------------------- Pallas wrappers ----------------------------------
def _conv_matmul(x_bf16, w_bf16, bias, tile_m):
    m, k = x_bf16.shape
    n = w_bf16.shape[1]
    return pl.pallas_call(
        _conv_matmul_kernel,
        out_shape=jax.ShapeDtypeStruct((m, n), jnp.float32),
        grid=(m // tile_m,),
        in_specs=[pl.BlockSpec((tile_m, k), lambda i: (i, 0)),
                  pl.BlockSpec((k, n), lambda i: (0, 0)),
                  pl.BlockSpec((1, n), lambda i: (0, 0))],
        out_specs=pl.BlockSpec((tile_m, n), lambda i: (i, 0)),
        compiler_params=pltpu.CompilerParams(dimension_semantics=("parallel",)),
    )(x_bf16, w_bf16, bias.reshape(1, n))


def _rpn_fused(patches_bf16, size_l, center_l, w_conv, b_conv, w_heads, b_heads,
               img_hw, tile_m):
    m, k = patches_bf16.shape
    c = w_conv.shape[1]
    kern = functools.partial(_rpn_fused_kernel, img_h=img_hw[0], img_w=img_hw[1])
    return pl.pallas_call(
        kern,
        out_shape=jax.ShapeDtypeStruct((m, OUT_LANES), jnp.float32),
        grid=(m // tile_m,),
        in_specs=[pl.BlockSpec((tile_m, k), lambda i: (i, 0)),
                  pl.BlockSpec((tile_m, OUT_LANES), lambda i: (i, 0)),
                  pl.BlockSpec((tile_m, OUT_LANES), lambda i: (i, 0)),
                  pl.BlockSpec((k, c), lambda i: (0, 0)),
                  pl.BlockSpec((1, c), lambda i: (0, 0)),
                  pl.BlockSpec((c, OUT_LANES), lambda i: (0, 0)),
                  pl.BlockSpec((1, OUT_LANES), lambda i: (0, 0))],
        out_specs=pl.BlockSpec((tile_m, OUT_LANES), lambda i: (i, 0)),
        compiler_params=pltpu.CompilerParams(dimension_semantics=("parallel",)),
    )(patches_bf16, size_l, center_l, w_conv, b_conv.reshape(1, c),
      w_heads, b_heads.reshape(1, OUT_LANES))


def _roi_fused(x_bf16, size_l, center_l, w6, b6, w7, b7, wo, bo, img_hw, tile_m):
    m, k = x_bf16.shape
    r = w6.shape[1]
    kern = functools.partial(_roi_fused_kernel, img_h=img_hw[0], img_w=img_hw[1])
    return pl.pallas_call(
        kern,
        out_shape=jax.ShapeDtypeStruct((m, OUT_LANES), jnp.float32),
        grid=(m // tile_m,),
        in_specs=[pl.BlockSpec((tile_m, k), lambda i: (i, 0)),
                  pl.BlockSpec((tile_m, OUT_LANES), lambda i: (i, 0)),
                  pl.BlockSpec((tile_m, OUT_LANES), lambda i: (i, 0)),
                  pl.BlockSpec((k, r), lambda i: (0, 0)),
                  pl.BlockSpec((1, r), lambda i: (0, 0)),
                  pl.BlockSpec((r, r), lambda i: (0, 0)),
                  pl.BlockSpec((1, r), lambda i: (0, 0)),
                  pl.BlockSpec((r, OUT_LANES), lambda i: (0, 0)),
                  pl.BlockSpec((1, OUT_LANES), lambda i: (0, 0))],
        out_specs=pl.BlockSpec((tile_m, OUT_LANES), lambda i: (i, 0)),
        compiler_params=pltpu.CompilerParams(dimension_semantics=("parallel",)),
    )(x_bf16, size_l, center_l, w6, b6.reshape(1, r), w7, b7.reshape(1, r),
      wo, bo.reshape(1, OUT_LANES))


# ------------------------------ glue helpers ----------------------------------
def _im2col_3x3(x):
    # x: (B,H,W,C) -> (B*H*W, 9*C), zero padding 1, stride 1
    b, h, w, c = x.shape
    xp = jnp.pad(x, ((0, 0), (1, 1), (1, 1), (0, 0)))
    cols = [xp[:, dy:dy + h, dx:dx + w, :] for dy in range(3) for dx in range(3)]
    return jnp.concatenate(cols, axis=-1).reshape(b * h * w, 9 * c)


def _make_anchor_lanes(h, w):
    # lane-aligned anchor planes (H*W,128) matching the head-output lane groups:
    #   size  : 8:12 wa | 16:20 ha | 24:28 wa | 32:36 ha   (per anchor)
    #   center: 8:12 cx | 16:20 cy
    ys = jnp.arange(h, dtype=jnp.float32) + 0.5
    xs = jnp.arange(w, dtype=jnp.float32) + 0.5
    cy, cx = jnp.meshgrid(ys, xs, indexing="ij")
    cx = jnp.broadcast_to(cx.reshape(h * w, 1), (h * w, NUM_ANCHORS))
    cy = jnp.broadcast_to(cy.reshape(h * w, 1), (h * w, NUM_ANCHORS))
    wa = jnp.broadcast_to(jnp.asarray(ANCHOR_SIZES, jnp.float32)[None, :],
                          (h * w, NUM_ANCHORS))
    size_l = jnp.zeros((h * w, OUT_LANES), jnp.float32)
    size_l = size_l.at[:, 8:8 + NUM_ANCHORS].set(wa)
    size_l = size_l.at[:, 16:16 + NUM_ANCHORS].set(wa)     # square anchors: ha = wa
    size_l = size_l.at[:, 24:24 + NUM_ANCHORS].set(wa)
    size_l = size_l.at[:, 32:32 + NUM_ANCHORS].set(wa)
    center_l = jnp.zeros((h * w, OUT_LANES), jnp.float32)
    center_l = center_l.at[:, 8:8 + NUM_ANCHORS].set(cx)
    center_l = center_l.at[:, 16:16 + NUM_ANCHORS].set(cy)
    return size_l, center_l


def _make_proposal_lanes(props):
    # props (N,4) x1,y1,x2,y2 -> lane-aligned size/center planes (N,128)
    n = props.shape[0]
    x1, y1, x2, y2 = props[:, 0:1], props[:, 1:2], props[:, 2:3], props[:, 3:4]
    pw, ph = x2 - x1, y2 - y1
    pcx, pcy = x1 + 0.5 * pw, y1 + 0.5 * ph
    size_l = jnp.zeros((n, OUT_LANES), jnp.float32)
    size_l = size_l.at[:, 8:16].set(jnp.broadcast_to(pw, (n, 8)))
    size_l = size_l.at[:, 16:24].set(jnp.broadcast_to(ph, (n, 8)))
    size_l = size_l.at[:, 24:32].set(jnp.broadcast_to(pw, (n, 8)))
    size_l = size_l.at[:, 32:40].set(jnp.broadcast_to(ph, (n, 8)))
    center_l = jnp.zeros((n, OUT_LANES), jnp.float32)
    center_l = center_l.at[:, 8:16].set(jnp.broadcast_to(pcx, (n, 8)))
    center_l = center_l.at[:, 16:24].set(jnp.broadcast_to(pcy, (n, 8)))
    return size_l, center_l


def _pack_rpn_head_weights(cls_w, cls_b, bbox_w, bbox_b):
    # one (C, 128) weight: lanes 0:4 objectness; lane 8+k*8+a <- bbox[:, a*4+k]
    c = cls_w.shape[0]
    w = jnp.zeros((c, OUT_LANES), jnp.float32)
    b = jnp.zeros((OUT_LANES,), jnp.float32)
    w = w.at[:, 0:NUM_ANCHORS].set(cls_w)
    b = b.at[0:NUM_ANCHORS].set(cls_b)
    src = jnp.array([a * 4 + k for k in range(4) for a in range(NUM_ANCHORS)])
    dst = jnp.array([8 + k * 8 + a for k in range(4) for a in range(NUM_ANCHORS)])
    w = w.at[:, dst].set(bbox_w[:, src])
    b = b.at[dst].set(bbox_b[src])
    return w.astype(jnp.bfloat16), b


def _pack_roi_head_weights(cls_w, cls_b, bbox_w, bbox_b):
    # one (R, 128) weight: lanes 0:8 class logits; lane 8+k*8+c <- bbox[:, c*4+k]/coder_w[k]
    r = cls_w.shape[0]
    coder = (10.0, 10.0, 5.0, 5.0)     # torchvision roi BoxCoder weights, folded in
    w = jnp.zeros((r, OUT_LANES), jnp.float32)
    b = jnp.zeros((OUT_LANES,), jnp.float32)
    w = w.at[:, 0:NUM_CLASSES].set(cls_w)
    b = b.at[0:NUM_CLASSES].set(cls_b)
    src = jnp.array([c * 4 + k for k in range(4) for c in range(NUM_CLASSES)])
    dst = jnp.array([8 + k * 8 + c for k in range(4) for c in range(NUM_CLASSES)])
    scale = jnp.array([1.0 / coder[k] for k in range(4) for _ in range(NUM_CLASSES)],
                      jnp.float32)
    w = w.at[:, dst].set(bbox_w[:, src] * scale[None, :])
    b = b.at[dst].set(bbox_b[src] * scale)
    return w.astype(jnp.bfloat16), b


def roi_pool(feats, proposals):
    # TODO(synk): true ROIAlign (data-dependent bilinear gather) kept in plain JAX;
    # nearest-neighbour sampling on a POOLxPOOL grid is used here.
    bx, h, w, c = feats.shape

    def pool_one(feat, box):
        x1, y1, x2, y2 = box[0], box[1], box[2], box[3]
        xs = x1 + (x2 - x1) * (jnp.arange(POOL, dtype=jnp.float32) + 0.5) / POOL
        ys = y1 + (y2 - y1) * (jnp.arange(POOL, dtype=jnp.float32) + 0.5) / POOL
        ix = jnp.clip(jnp.floor(xs), 0, w - 1).astype(jnp.int32)
        iy = jnp.clip(jnp.floor(ys), 0, h - 1).astype(jnp.int32)
        return feat[iy[:, None], ix[None, :], :]

    return jax.vmap(lambda f, bs: jax.vmap(lambda b_: pool_one(f, b_))(bs))(feats, proposals)


# ------------------------------ parameters ------------------------------------
def init_params(key):
    ks = jax.random.split(key, 8)

    def w(k, shape, scale=0.05):
        return jax.random.normal(k, shape, jnp.float32) * scale

    return {
        "backbone_w": w(ks[0], (3, 3, IMG_C, FEAT_C)),
        "backbone_b": jnp.zeros((FEAT_C,), jnp.float32),
        "rpn_conv_w": w(ks[1], (3, 3, FEAT_C, FEAT_C)),
        "rpn_conv_b": jnp.zeros((FEAT_C,), jnp.float32),
        "rpn_cls_w": w(ks[2], (FEAT_C, NUM_ANCHORS)),
        "rpn_cls_b": jnp.zeros((NUM_ANCHORS,), jnp.float32),
        "rpn_bbox_w": w(ks[3], (FEAT_C, NUM_ANCHORS * 4)),
        "rpn_bbox_b": jnp.zeros((NUM_ANCHORS * 4,), jnp.float32),
        "fc6_w": w(ks[4], (POOL * POOL * FEAT_C, REPR_SIZE), 0.02),
        "fc6_b": jnp.zeros((REPR_SIZE,), jnp.float32),
        "fc7_w": w(ks[5], (REPR_SIZE, REPR_SIZE), 0.02),
        "fc7_b": jnp.zeros((REPR_SIZE,), jnp.float32),
        "cls_w": w(ks[6], (REPR_SIZE, NUM_CLASSES), 0.02),
        "cls_b": jnp.zeros((NUM_CLASSES,), jnp.float32),
        "bbox_w": w(ks[7], (REPR_SIZE, NUM_CLASSES * 4), 0.02),
        "bbox_b": jnp.zeros((NUM_CLASSES * 4,), jnp.float32),
    }


# ------------------------------ forward pass ----------------------------------
def faster_rcnn_forward(params, images_nchw):
    """FasterRCNNBase.forward, eval mode (targets=None -> returns detections)."""
    original_image_sizes = [(int(im.shape[-2]), int(im.shape[-1])) for im in images_nchw]

    # ---- self.transform(images): normalize + batch (folded into backbone conv) ----
    x = jnp.stack(images_nchw, axis=0)                  # (B,3,H,W) NCHW input
    x = jnp.transpose(x, (0, 2, 3, 1))                  # -> NHWC
    bx, h, w, _ = x.shape
    mean = jnp.array([0.485, 0.456, 0.406], jnp.float32)
    inv_std = 1.0 / jnp.array([0.229, 0.224, 0.225], jnp.float32)
    image_sizes = [(h, w)] * bx
    # TODO(synk): GeneralizedRCNNTransform bilinear resize not implemented (identity here).

    megacore = _is_megacore()
    m_px = bx * h * w

    # ---- self.backbone(images.tensors): 3x3 conv + relu ---------------------
    # Exact fold: pad0((x-mean)*inv_std) conv W  ==  pad0(x-mean) conv (W*inv_std).
    # 4 pixels are packed per 128-lane row (block-diagonal weight) so the kernel's
    # input, weight and output are all lane-dense (no masked stores, better MXU fill).
    xc = x - mean
    patches = _im2col_3x3(xc)                                          # (B*H*W, 27)
    patches = jnp.pad(patches, ((0, 0), (0, 32 - 9 * IMG_C)))          # -> 32 cols
    patches4 = patches.reshape(m_px // 4, 4 * 32).astype(jnp.bfloat16)  # (M/4, 128)
    w_small = (params["backbone_w"] * inv_std[None, None, :, None]).reshape(9 * IMG_C, FEAT_C)
    w_small = jnp.pad(w_small, ((0, 32 - 9 * IMG_C), (0, 0)))          # (32, 32)
    w_blk = jnp.zeros((128, 128), jnp.float32)
    for g in range(4):
        w_blk = w_blk.at[g * 32:(g + 1) * 32, g * 32:(g + 1) * 32].set(w_small)
    b_blk = jnp.tile(params["backbone_b"], 4)                          # (128,)
    m_bb = m_px // 4
    tile_bb = 64 if megacore else m_bb
    feats_flat = _conv_matmul(patches4, w_blk.astype(jnp.bfloat16), b_blk, tile_m=tile_bb)
    feats = feats_flat.reshape(bx, h, w, FEAT_C)

    # ---- self.rpn(images, features): fused conv + heads + decode + clip -----
    # TODO(synk): backbone->RPN fusion (in-kernel 3x3 via shifted matmuls / halo DMA)
    # not done; the feature im2col still materializes on the host.
    rpn_k = 3 * OUT_LANES                                              # pad K 288 -> 384
    rpn_patches = _im2col_3x3(feats)                                   # (B*H*W, 288)
    rpn_patches = jnp.pad(rpn_patches, ((0, 0), (0, rpn_k - 9 * FEAT_C))).astype(jnp.bfloat16)
    size_l, center_l = _make_anchor_lanes(h, w)
    size_l = jnp.tile(size_l, (bx, 1))                                 # (B*H*W, 128)
    center_l = jnp.tile(center_l, (bx, 1))
    w_rc = params["rpn_conv_w"].reshape(9 * FEAT_C, FEAT_C)
    w_rc = jnp.pad(w_rc, ((0, rpn_k - 9 * FEAT_C), (0, 0))).astype(jnp.bfloat16)
    w_rh, b_rh = _pack_rpn_head_weights(params["rpn_cls_w"], params["rpn_cls_b"],
                                        params["rpn_bbox_w"], params["rpn_bbox_b"])
    tile_rpn = 128 if megacore else m_px
    rpn_out = _rpn_fused(rpn_patches, size_l, center_l, w_rc, params["rpn_conv_b"],
                         w_rh, b_rh, (h, w), tile_m=tile_rpn)          # (B*H*W, 128)

    objectness = rpn_out[:, 0:NUM_ANCHORS].reshape(bx, h * w * NUM_ANCHORS)
    boxes_all = jnp.stack([rpn_out[:, 8:8 + NUM_ANCHORS],
                           rpn_out[:, 16:16 + NUM_ANCHORS],
                           rpn_out[:, 24:24 + NUM_ANCHORS],
                           rpn_out[:, 32:32 + NUM_ANCHORS]], axis=-1)
    boxes_all = boxes_all.reshape(bx, h * w * NUM_ANCHORS, 4)
    # TODO(synk): RPN NMS / min-size filtering omitted; top-k objectness selection only.
    _, top_idx = jax.lax.top_k(objectness, PRE_NMS_TOP_N)              # (B,P)
    proposals = jnp.take_along_axis(boxes_all, top_idx[..., None], axis=1)  # (B,P,4)
    proposal_losses = {}

    # ---- self.roi_heads(features, proposals, image_sizes) -------------------
    # TODO(synk): ROI feature gather not fused into the kernel (would need scalar
    # prefetch + manual pltpu.make_async_copy); pooled features go through HBM once.
    pooled = roi_pool(feats, proposals)                                # (B,P,7,7,C)
    roi_k = 13 * OUT_LANES                                             # pad K 1568 -> 1664
    flat = pooled.reshape(bx * PRE_NMS_TOP_N, POOL * POOL * FEAT_C)
    flat = jnp.pad(flat, ((0, 0), (0, roi_k - POOL * POOL * FEAT_C))).astype(jnp.bfloat16)
    prop_flat = proposals.reshape(bx * PRE_NMS_TOP_N, 4)
    psize_l, pcenter_l = _make_proposal_lanes(prop_flat)
    w6 = jnp.pad(params["fc6_w"], ((0, roi_k - POOL * POOL * FEAT_C), (0, 0))).astype(jnp.bfloat16)
    w_ro, b_ro = _pack_roi_head_weights(params["cls_w"], params["cls_b"],
                                        params["bbox_w"], params["bbox_b"])
    # TODO(synk): v7x could hold fc6/fc7 weights in fp8 to halve weight DMA; not done.
    m_roi = bx * PRE_NMS_TOP_N
    tile_roi = 64 if megacore else m_roi
    roi_out = _roi_fused(flat, psize_l, pcenter_l,
                         w6, params["fc6_b"],
                         params["fc7_w"].astype(jnp.bfloat16), params["fc7_b"],
                         w_ro, b_ro, (h, w), tile_m=tile_roi)          # (B*P, 128)

    probs = roi_out[:, 0:NUM_CLASSES]
    fg = probs[:, 1:]
    labels = jnp.argmax(fg, axis=-1).astype(jnp.int32) + 1             # (B*P,)
    scores = jnp.max(fg, axis=-1)
    boxes_cls = jnp.stack([roi_out[:, 8:8 + NUM_CLASSES],
                           roi_out[:, 16:16 + NUM_CLASSES],
                           roi_out[:, 24:24 + NUM_CLASSES],
                           roi_out[:, 32:32 + NUM_CLASSES]], axis=1)   # (B*P,4,NC)
    det_boxes = jnp.take_along_axis(boxes_cls, labels[:, None, None], axis=2)[:, :, 0]
    det_boxes = det_boxes.reshape(bx, PRE_NMS_TOP_N, 4)
    detector_losses = {}
    # TODO(synk): per-class NMS + score thresholding in postprocess_detections omitted.

    # ---- self.transform.postprocess: rescale to original image sizes --------
    detections = []
    labels = labels.reshape(bx, PRE_NMS_TOP_N)
    scores = scores.reshape(bx, PRE_NMS_TOP_N)
    for b, (oh, ow) in enumerate(original_image_sizes):
        rh = oh / image_sizes[b][0]
        rw = ow / image_sizes[b][1]
        scale = jnp.array([rw, rh, rw, rh], jnp.float32)
        detections.append(
            {"boxes": det_boxes[b] * scale, "labels": labels[b], "scores": scores[b]}
        )

    losses = {}
    losses.update(detector_losses)
    losses.update(proposal_losses)
    # eval mode -> eager_outputs(losses, detections) returns detections
    return detections


# ---------------------------------- main --------------------------------------
if __name__ == "__main__":
    key = jax.random.PRNGKey(0)
    pkey, ikey = jax.random.split(key)
    params = init_params(pkey)
    img_keys = jax.random.split(ikey, B)
    images = [jax.random.uniform(k, (IMG_C, IMG_H, IMG_W), jnp.float32) for k in img_keys]

    detections = faster_rcnn_forward(params, images)
    jax.block_until_ready(detections)

    assert len(detections) == B
    assert detections[0]["boxes"].shape == (PRE_NMS_TOP_N, 4)
    assert detections[0]["labels"].shape == (PRE_NMS_TOP_N,)
    assert detections[0]["scores"].shape == (PRE_NMS_TOP_N,)
    print("KERNEL_OK")
</pallas_src>

<mosaic_0001>
module attributes {stable_mosaic.version = 11 : i64} {
  func.func @_conv_matmul_kernel(%arg0: i32, %arg1: memref<128x128xbf16, #tpu.memory_space<vmem>>, %arg2: memref<128x128xbf16, #tpu.memory_space<vmem>>, %arg3: memref<1x128xf32, #tpu.memory_space<vmem>>, %arg4: memref<128x128xf32, #tpu.memory_space<vmem>>) attributes {dimension_semantics = [#tpu.dimension_semantics<parallel>], iteration_bounds = array<i64: 1>, scalar_prefetch = 0 : i64, scratch_operands = 0 : i64, tpu.core_type = #tpu.core_type<tc>, window_params = [{transform_indices = @transform_0, window_bounds = array<i64: 128, 128>}, {pipeline_mode = #tpu.pipeline_mode<synchronous>, transform_indices = @transform_1, window_bounds = array<i64: 128, 128>}, {pipeline_mode = #tpu.pipeline_mode<synchronous>, transform_indices = @transform_2, window_bounds = array<i64: 1, 128>}, {transform_indices = @transform_3, window_bounds = array<i64: 128, 128>}]} {
    %c0 = arith.constant 0 : index
    %c0_0 = arith.constant 0 : index
    %0 = vector.load %arg1[%c0, %c0_0] : memref<128x128xbf16, #tpu.memory_space<vmem>>, vector<128x128xbf16>
    %c0_1 = arith.constant 0 : index
    %c0_2 = arith.constant 0 : index
    %1 = vector.load %arg2[%c0_1, %c0_2] : memref<128x128xbf16, #tpu.memory_space<vmem>>, vector<128x128xbf16>
    %cst = arith.constant dense<0.000000e+00> : vector<128x128xf32>
    %2 = tpu.matmul %0, %1, %cst {dimension_numbers = #tpu.dot_dimension_numbers<[1], [0], [0], [1], [0, 0, 1, 1], [], []>} : vector<128x128xbf16>, vector<128x128xbf16>, vector<128x128xf32> -> vector<128x128xf32>
    %c0_3 = arith.constant 0 : index
    %c0_4 = arith.constant 0 : index
    %3 = vector.load %arg3[%c0_3, %c0_4] : memref<1x128xf32, #tpu.memory_space<vmem>>, vector<1x128xf32>
    %4 = vector.broadcast %3 : vector<1x128xf32> to vector<128x128xf32>
    %5 = arith.addf %2, %4 : vector<128x128xf32>
    %cst_5 = arith.constant 0.000000e+00 : f32
    %6 = vector.broadcast %cst_5 : f32 to vector<128x128xf32>
    %7 = arith.maximumf %5, %6 : vector<128x128xf32>
    %c0_6 = arith.constant 0 : index
    %c0_7 = arith.constant 0 : index
    %8 = vector.load %arg4[%c0_6, %c0_7] : memref<128x128xf32, #tpu.memory_space<vmem>>, vector<128x128xf32>
    tpu.vector_store %arg4[%c0_6, %c0_7], %7 {strides = array<i32>} : memref<128x128xf32, #tpu.memory_space<vmem>>, vector<128x128xf32>,
    return
  }
  func.func @transform_0(%arg0: i32) -> (i32, i32) {
    %c0_i32 = arith.constant 0 : i32
    %c0_i32_0 = arith.constant 0 : i32
    return %arg0, %c0_i32 : i32, i32
  }
  func.func @transform_1(%arg0: i32) -> (i32, i32) {
    %c0_i32 = arith.constant 0 : i32
    %c0_i32_0 = arith.constant 0 : i32
    %c0_i32_1 = arith.constant 0 : i32
    return %c0_i32, %c0_i32_0 : i32, i32
  }
  func.func @transform_2(%arg0: i32) -> (i32, i32) {
    %c0_i32 = arith.constant 0 : i32
    %c0_i32_0 = arith.constant 0 : i32
    %c0_i32_1 = arith.constant 0 : i32
    return %c0_i32, %c0_i32_0 : i32, i32
  }
  func.func @transform_3(%arg0: i32) -> (i32, i32) {
    %c0_i32 = arith.constant 0 : i32
    %c0_i32_0 = arith.constant 0 : i32
    return %arg0, %c0_i32 : i32, i32
  }
}

</mosaic_0001>

<llo_original>
// kernel: tpu_custom_call.1
$region0: #{tpu_custom_call.1}
  #allocation0 [shape = 'u32[]', space=smem, size = 0x4, offset = 0x4, fixed_abs, tag = 'smem constant byte address 0x4 - core index']
  #allocation1 [shape = 'u32[144,128]{1,0:T(1,128)}', space=vmem, size = 0x12000, scoped, tag = 'internal scratch']
  %s0 = inlined_call_operand.hbm [shape: bf16[128,128], index: 0, kind: input, shape index: {}]
  %s1 = inlined_call_operand.hbm [shape: bf16[128,128], index: 1, kind: input, shape index: {}]
  %s2 = inlined_call_operand.vmem [shape: f32[1,128], index: 2, kind: input, shape index: {}]
  %s3 = inlined_call_operand.hbm [shape: f32[128,128], index: 3, kind: output, shape index: {}]
  %s4 = sld [smem:[#allocation0]]
  $region30: #{tpu_custom_call.1} parent=0
    _
  %s6 = ssub.s32 1, %s4
  %s7 = scalar_select 0, %s6, %s4
  $region1: #{tpu_custom_call.1} parent=0
    #allocation2 [shape = 'u8[32768]{0}', space=vmem, size = 0x8000, scoped, tag = 'input window, operand 0, single buffered']
    #allocation3 [shape = 's32[1]{0}', space=sflag, size = 0x4, scoped, tag = 'scoped memory for tpu_custom_call.1']
    #allocation4 [shape = 's32[1]{0}', space=sflag, size = 0x4, scoped, tag = 'scoped memory for tpu_custom_call.1']
    #allocation5 [shape = 'u8[32768]{0}', space=vmem, size = 0x8000, scoped, tag = 'input window, operand 1, single buffered']
    #allocation6 [shape = 's32[1]{0}', space=sflag, size = 0x4, scoped, tag = 'scoped memory for tpu_custom_call.1']
    #allocation7 [shape = 'u8[65536]{0}', space=vmem, size = 0x10000, scoped, tag = 'output window, operand 0, single buffered']
    %8 = vsyncpa [#allocation3], 0
    %9 = vsyncpa [#allocation6], 0
    %10 = vsyncpa [#allocation4], 0
    // Predicated region
    $region2: #{tpu_custom_call.1} parent=1 // pred_check
      _
    $region3: #{tpu_custom_call.1} parent=1 // pred_check_branch
      %12 = sbr.rel (0) target = $region5
    $region4: #{tpu_custom_call.1} parent=1 // pred_region
      %s14 = ssub.s32 1024, 1024
      %15 = vsyncadd [#allocation3], %s14
      %s16 = sshll.u32 [#allocation2], 4
      %s17 = int_to_ptr.vmem [resolvable:$true] %s16
      %22 = dma.hbm_to_vmem [thread:$0]  %s0, 1024, %s17, [#allocation3], 64, 64, 4
    $region5: #{tpu_custom_call.1} parent=1 // pred_fallthru
      _
    // Predicated region
    $region6: #{tpu_custom_call.1} parent=1 // pred_check
      _
    $region7: #{tpu_custom_call.1} parent=1 // pred_check_branch
      %24 = sbr.rel (0) target = $region9
    $region8: #{tpu_custom_call.1} parent=1 // pred_region
      %s26 = ssub.s32 1024, 1024
      %27 = vsyncadd [#allocation6], %s26
      %s28 = sshll.u32 [#allocation5], 4
      %s29 = int_to_ptr.vmem [resolvable:$true] %s28
      %34 = dma.hbm_to_vmem [thread:$0]  %s1, 1024, %s29, [#allocation6], 64, 64, 4
    $region9: #{tpu_custom_call.1} parent=1 // pred_fallthru
      _
    // Predicated region
    $region10: #{tpu_custom_call.1} parent=1 // pred_check
      _
    $region11: #{tpu_custom_call.1} parent=1 // pred_check_branch
      %36 = sbr.rel (0) target = $region13
    $region12: #{tpu_custom_call.1} parent=1 // pred_region
      _
    $region13: #{tpu_custom_call.1} parent=1 // pred_fallthru
      _
    // Predicated region
    $region14: #{tpu_custom_call.1} parent=1 // pred_check
      _
    $region15: #{tpu_custom_call.1} parent=1 // pred_check_branch
      %38 = sbr.rel (0) target = $region17
    $region16: #{tpu_custom_call.1} parent=1 // pred_region
      %39 = dma.done [#allocation3], 1024
    $region17: #{tpu_custom_call.1} parent=1 // pred_fallthru
      _
    // Predicated region
    $region18: #{tpu_custom_call.1} parent=1 // pred_check
      _
    $region19: #{tpu_custom_call.1} parent=1 // pred_check_branch
      %41 = sbr.rel (0) target = $region21
    $region20: #{tpu_custom_call.1} parent=1 // pred_region
      %42 = dma.done [#allocation6], 1024
    $region21: #{tpu_custom_call.1} parent=1 // pred_fallthru
      _
    %v44 = vld [vmem:[#allocation2] sm:$0xf]
    %v45 = vld [vmem:[#allocation2 + $0x4] sm:$0xf]
    %v46 = vld [vmem:[#allocation2 + $0x8] sm:$0xf]
    %v47 = vld [vmem:[#allocation2 + $0xc] sm:$0xf]
    %v48 = vld [vmem:[#allocation2 + $0x10] sm:$0xf]
    %v49 = vld [vmem:[#allocation2 + $0x14] sm:$0xf]
    %v50 = vld [vmem:[#allocation2 + $0x18] sm:$0xf]
    %v51 = vld [vmem:[#allocation2 + $0x1c] sm:$0xf]
    %v52 = vld [vmem:[#allocation2 + $0x20] sm:$0xf]
    %v53 = vld [vmem:[#allocation2 + $0x24] sm:$0xf]
    %v54 = vld [vmem:[#allocation2 + $0x28] sm:$0xf]
    %v55 = vld [vmem:[#allocation2 + $0x2c] sm:$0xf]
    %v56 = vld [vmem:[#allocation2 + $0x30] sm:$0xf]
    %v57 = vld [vmem:[#allocation2 + $0x34] sm:$0xf]
    %v58 = vld [vmem:[#allocation2 + $0x38] sm:$0xf]
    %v59 = vld [vmem:[#allocation2 + $0x3c] sm:$0xf]
    %v60 = vld [vmem:[#allocation5] sm:$0xf]
    %v61 = vld [vmem:[#allocation5 + $0x4] sm:$0xf]
    %v62 = vld [vmem:[#allocation5 + $0x8] sm:$0xf]
    %v63 = vld [vmem:[#allocation5 + $0xc] sm:$0xf]
    %v64 = vld [vmem:[#allocation5 + $0x10] sm:$0xf]
    %v65 = vld [vmem:[#allocation5 + $0x14] sm:$0xf]
    %v66 = vld [vmem:[#allocation5 + $0x18] sm:$0xf]
    %v67 = vld [vmem:[#allocation5 + $0x1c] sm:$0xf]
    %v68 = vld [vmem:[#allocation5 + $0x20] sm:$0xf]
    %v69 = vld [vmem:[#allocation5 + $0x24] sm:$0xf]
    %v70 = vld [vmem:[#allocation5 + $0x28] sm:$0xf]
    %v71 = vld [vmem:[#allocation5 + $0x2c] sm:$0xf]
    %v72 = vld [vmem:[#allocation5 + $0x30] sm:$0xf]
    %v73 = vld [vmem:[#allocation5 + $0x34] sm:$0xf]
    %v74 = vld [vmem:[#allocation5 + $0x38] sm:$0xf]
    %v75 = vld [vmem:[#allocation5 + $0x3c] sm:$0xf]
    %v76 = vld [vmem:[%s2] sm:$0x1]
    %v78 = vlaneseq
    %v79 = vshrl.u32 %v78, 7
    %v80 = vsub.s32 0, %v79
    %v81 = vrot.slane %v76, %v80
    %v99 = vunpack.c.l.b16 %v44
    %v100 = vunpack.c.l.b16 %v45
    %v101 = vunpack.c.l.b16 %v46
    %v102 = vunpack.c.l.b16 %v47
    %v103 = vunpack.c.l.b16 %v48
    %v104 = vunpack.c.l.b16 %v49
    %v105 = vunpack.c.l.b16 %v50
    %v106 = vunpack.c.l.b16 %v51
    %v107 = vunpack.c.l.b16 %v52
    %v108 = vunpack.c.l.b16 %v53
    %v109 = vunpack.c.l.b16 %v54
    %v110 = vunpack.c.l.b16 %v55
    %v111 = vunpack.c.l.b16 %v56
    %v112 = vunpack.c.l.b16 %v57
    %v113 = vunpack.c.l.b16 %v58
    %v114 = vunpack.c.l.b16 %v59
    %v115 = vpack.c.b16 %v100, %v99
    %v116 = vpack.c.b16 %v102, %v101
    %v117 = vpack.c.b16 %v104, %v103
    %v118 = vpack.c.b16 %v106, %v105
    %v119 = vpack.c.b16 %v108, %v107
    %v120 = vpack.c.b16 %v110, %v109
    %v121 = vpack.c.b16 %v112, %v111
    %v122 = vpack.c.b16 %v114, %v113
    %v147 = vunpack.c.l.b16 %v60
    %v148 = vunpack.c.l.b16 %v61
    %v149 = vunpack.c.l.b16 %v62
    %v150 = vunpack.c.l.b16 %v63
    %v151 = vunpack.c.l.b16 %v64
    %v152 = vunpack.c.l.b16 %v65
    %v153 = vunpack.c.l.b16 %v66
    %v154 = vunpack.c.l.b16 %v67
    %v155 = vunpack.c.l.b16 %v68
    %v156 = vunpack.c.l.b16 %v69
    %v157 = vunpack.c.l.b16 %v70
    %v158 = vunpack.c.l.b16 %v71
    %v159 = vunpack.c.l.b16 %v72
    %v160 = vunpack.c.l.b16 %v73
    %v161 = vunpack.c.l.b16 %v74
    %v162 = vunpack.c.l.b16 %v75
    %v163 = vpack.c.b16 %v148, %v147
    %v164 = vpack.c.b16 %v150, %v149
    %v165 = vpack.c.b16 %v152, %v151
    %v166 = vpack.c.b16 %v154, %v153
    %v167 = vpack.c.b16 %v156, %v155
    %v168 = vpack.c.b16 %v158, %v157
    %v169 = vpack.c.b16 %v160, %v159
    %v170 = vpack.c.b16 %v162, %v161
    %179 = vmatprep.subr.bf16.mxu0 0
    %180 = vmatpush1.bf16.msra.mxu0 %v163
    %181 = vmatprep.subr.bf16.mxu0 0
    %182 = vmatpush1.bf16.msra.mxu0 %v164
    %183 = vmatprep.subr.bf16.mxu0 0
    %184 = vmatpush1.bf16.msra.mxu0 %v165
    %185 = vmatprep.subr.bf16.mxu0 0
    %186 = vmatpush1.bf16.msra.mxu0 %v166
    %187 = vmatprep.subr.bf16.mxu0 0
    %188 = vmatpush1.bf16.msra.mxu0 %v167
    %189 = vmatprep.subr.bf16.mxu0 0
    %190 = vmatpush1.bf16.msra.mxu0 %v168
    %191 = vmatprep.subr.bf16.mxu0 0
    %192 = vmatpush1.bf16.msra.mxu0 %v169
    %193 = vmatprep.subr.bf16.mxu0 0
    %194 = vmatpush1.bf16.msra.mxu0 %v170
    %195 = vmatprep.subr.bf16.mxu0 0
    %196 = vmatpush1.bf16.msra.mxu0 0
    %197 = vmatprep.subr.bf16.mxu0 0
    %198 = vmatpush1.bf16.msra.mxu0 0
    %199 = vmatprep.subr.bf16.mxu0 0
    %200 = vmatpush1.bf16.msra.mxu0 0
    %201 = vmatprep.subr.bf16.mxu0 0
    %202 = vmatpush1.bf16.msra.mxu0 0
    %203 = vmatprep.subr.bf16.mxu0 0
    %204 = vmatpush1.bf16.msra.mxu0 0
    %205 = vmatprep.subr.bf16.mxu0 0
    %206 = vmatpush1.bf16.msra.mxu0 0
    %207 = vmatprep.subr.bf16.mxu0 0
    %208 = vmatpush1.bf16.msra.mxu0 0
    %209 = vmatprep.subr.bf16.mxu0 0
    %210 = vmatpush1.bf16.msra.mxu0 0
    %211 = vmatprep.mubr.bf16.mxu0 0
    %212 = vmatmul.mubr.bf16.gmra.mrb[0].mxu0 %v115
    %v213 = vpop.f32.mrb[0].mxu0
    %v214 = vadd.f32 %v81, %v213
    %v215 = vpop.f32.mrb[0].mxu0
    %v216 = vpop.f32.mrb[0].mxu0
    %v217 = vadd.f32 %v81, %v216
    %v218 = vpop.f32.mrb[0].mxu0
    %219 = vmatprep.mubr.bf16.mxu0 0
    %220 = vmatmul.mubr.bf16.gmra.mrb[0].mxu0 %v116
    %v221 = vpop.f32.mrb[0].mxu0
    %v222 = vadd.f32 %v81, %v221
    %v223 = vpop.f32.mrb[0].mxu0
    %v224 = vpop.f32.mrb[0].mxu0
    %v225 = vadd.f32 %v81, %v224
    %v226 = vpop.f32.mrb[0].mxu0
    %227 = vmatprep.mubr.bf16.mxu0 0
    %228 = vmatmul.mubr.bf16.gmra.mrb[0].mxu0 %v117
    %v229 = vpop.f32.mrb[0].mxu0
    %v230 = vadd.f32 %v81, %v229
    %v231 = vpop.f32.mrb[0].mxu0
    %v232 = vpop.f32.mrb[0].mxu0
    %v233 = vadd.f32 %v81, %v232
    %v234 = vpop.f32.mrb[0].mxu0
    %235 = vmatprep.mubr.bf16.mxu0 0
    %236 = vmatmul.mubr.bf16.gmra.mrb[0].mxu0 %v118
    %v237 = vpop.f32.mrb[0].mxu0
    %v238 = vadd.f32 %v81, %v237
    %v239 = vpop.f32.mrb[0].mxu0
    %v240 = vpop.f32.mrb[0].mxu0
    %v241 = vadd.f32 %v81, %v240
    %v242 = vpop.f32.mrb[0].mxu0
    %243 = vmatprep.mubr.bf16.mxu0 0
    %244 = vmatmul.mubr.bf16.gmra.mrb[0].mxu0 %v119
    %v245 = vpop.f32.mrb[0].mxu0
    %v246 = vadd.f32 %v81, %v245
    %v247 = vpop.f32.mrb[0].mxu0
    %v248 = vpop.f32.mrb[0].mxu0
    %v249 = vadd.f32 %v81, %v248
    %v250 = vpop.f32.mrb[0].mxu0
    %251 = vmatprep.mubr.bf16.mxu0 0
    %252 = vmatmul.mubr.bf16.gmra.mrb[0].mxu0 %v120
    %v253 = vpop.f32.mrb[0].mxu0
    %v254 = vadd.f32 %v81, %v253
    %v255 = vpop.f32.mrb[0].mxu0
    %v256 = vpop.f32.mrb[0].mxu0
    %v257 = vadd.f32 %v81, %v256
    %v258 = vpop.f32.mrb[0].mxu0
    %259 = vmatprep.mubr.bf16.mxu0 0
    %260 = vmatmul.mubr.bf16.gmra.mrb[0].mxu0 %v121
    %v261 = vpop.f32.mrb[0].mxu0
    %v262 = vadd.f32 %v81, %v261
    %v263 = vpop.f32.mrb[0].mxu0
    %v264 = vpop.f32.mrb[0].mxu0
    %v265 = vadd.f32 %v81, %v264
    %v266 = vpop.f32.mrb[0].mxu0
    %267 = vmatprep.mubr.bf16.mxu0 0
    %268 = vmatmul.mubr.bf16.gmra.mrb[0].mxu0 %v122
    %v269 = vpop.f32.mrb[0].mxu0
    %v270 = vadd.f32 %v81, %v269
    %v271 = vpop.f32.mrb[0].mxu0
    %v272 = vpop.f32.mrb[0].mxu0
    %v273 = vadd.f32 %v81, %v272
    %v274 = vpop.f32.mrb[0].mxu0
    %275 = vdwg.mxu0
    %v276 = vmax.f32 %v214, 0.0
    %v277 = vmax.f32 %v217, 0.0
    %v278 = vmax.f32 %v222, 0.0
    %v279 = vmax.f32 %v225, 0.0
    %v280 = vmax.f32 %v230, 0.0
    %v281 = vmax.f32 %v233, 0.0
    %v282 = vmax.f32 %v238, 0.0
    %v283 = vmax.f32 %v241, 0.0
    %v284 = vmax.f32 %v246, 0.0
    %v285 = vmax.f32 %v249, 0.0
    %v286 = vmax.f32 %v254, 0.0
    %v287 = vmax.f32 %v257, 0.0
    %v288 = vmax.f32 %v262, 0.0
    %v289 = vmax.f32 %v265, 0.0
    %v290 = vmax.f32 %v270, 0.0
    %v291 = vmax.f32 %v273, 0.0
    %292 = vst [vmem:[#allocation7] sm:$0xff] %v276
    %293 = vst [vmem:[#allocation7 + $0x8] sm:$0xff] %v277
    %294 = vst [vmem:[#allocation7 + $0x10] sm:$0xff] %v278
    %295 = vst [vmem:[#allocation7 + $0x18] sm:$0xff] %v279
    %296 = vst [vmem:[#allocation7 + $0x20] sm:$0xff] %v280
    %297 = vst [vmem:[#allocation7 + $0x28] sm:$0xff] %v281
    %298 = vst [vmem:[#allocation7 + $0x30] sm:$0xff] %v282
    %299 = vst [vmem:[#allocation7 + $0x38] sm:$0xff] %v283
    %300 = vst [vmem:[#allocation7 + $0x40] sm:$0xff] %v284
    %301 = vst [vmem:[#allocation7 + $0x48] sm:$0xff] %v285
    %302 = vst [vmem:[#allocation7 + $0x50] sm:$0xff] %v286
    %303 = vst [vmem:[#allocation7 + $0x58] sm:$0xff] %v287
    %304 = vst [vmem:[#allocation7 + $0x60] sm:$0xff] %v288
    %305 = vst [vmem:[#allocation7 + $0x68] sm:$0xff] %v289
    %306 = vst [vmem:[#allocation7 + $0x70] sm:$0xff] %v290
    %307 = vst [vmem:[#allocation7 + $0x78] sm:$0xff] %v291
    // Predicated region
    $region22: #{tpu_custom_call.1} parent=1 // pred_check
      _
    $region23: #{tpu_custom_call.1} parent=1 // pred_check_branch
      %309 = sbr.rel (0) target = $region25
    $region24: #{tpu_custom_call.1} parent=1 // pred_region
      %s311 = ssub.s32 2048, 2048
      %312 = vsyncadd [#allocation4], %s311
      %s313 = sshll.u32 [#allocation7], 4
      %s314 = int_to_ptr.vmem [resolvable:$true] %s313
      %319 = dma.vmem_to_hbm [thread:$0]  %s314, 2048, %s3, [#allocation4], 128, 128, 8
    $region25: #{tpu_custom_call.1} parent=1 // pred_fallthru
      _
    // Predicated region
    $region26: #{tpu_custom_call.1} parent=1 // pred_check
      _
    $region27: #{tpu_custom_call.1} parent=1 // pred_check_branch
      %321 = sbr.rel (0) target = $region29
    $region28: #{tpu_custom_call.1} parent=1 // pred_region
      %322 = dma.done [#allocation4], 2048
    $region29: #{tpu_custom_call.1} parent=1 // pred_fallthru
      _
    %323 = vsyncpa [#allocation3], 1
    %324 = vsyncpa [#allocation6], 1
    %325 = vsyncpa [#allocation4], 1

</llo_original>
